<compile_context>
chip_gen: v7x
topology: tpu7x:2x2x1
jax: 0.10.0
libtpu: 0.0.40
codegen_flags: <defaults>
</compile_context>

<pallas_src>
import functools

import jax
import jax.numpy as jnp
from jax.experimental import pallas as pl
from jax.experimental.pallas import tpu as pltpu

_LANE = 128
_TILE_BYTES = 2 << 20     # ~2 MiB per-array tile (v5e-safe, saturates HBM)
_SPLIT_BYTES = 512 << 10  # force grid >= 2 for slabs above this (v7x 2nd TC)


def _fadein_kernel(w_ref, a_ref, b_ref, o_ref, *, compute_dtype):
    # w_ref: SMEM (2,) f32 -> [alpha, 1 - alpha]
    # a_ref / b_ref / o_ref: VMEM (tm, width) tiles.
    alpha = w_ref[0].astype(compute_dtype)
    w0 = w_ref[1].astype(compute_dtype)
    a = a_ref[...].astype(compute_dtype)
    b = b_ref[...].astype(compute_dtype)
    o_ref[...] = (a * w0 + b * alpha).astype(o_ref.dtype)


def _choose_layout(total, itemsize):
    """Pick a lane-dense slab (rows, width) and a sublane-aligned row tile."""
    sub = max(8, 32 // itemsize)  # dtype-native sublane multiple (8/16/32)
    width = _LANE
    for cand in (4096, 2048, 1024, 512, 256):
        if total % cand == 0 and (total // cand) >= sub:
            width = cand
            break
    rows = total // width
    row_bytes = width * itemsize
    max_tm = max(sub, (_TILE_BYTES // row_bytes) // sub * sub)
    if rows > max_tm:
        tm = max_tm
    else:
        tm = rows
        # Mid-size slabs: split into >= 2 blocks so v7x's second TensorCore
        # participates and input/output DMAs pipeline.
        if rows * row_bytes >= _SPLIT_BYTES:
            half = -(-((rows + 1) // 2) // sub) * sub
            if half < rows:
                tm = half
    return rows, width, tm


def _lerp_xla(a, b, alpha_f32, compute_dtype, out_dtype):
    w1 = alpha_f32.astype(compute_dtype)
    w0 = (jnp.float32(1.0) - alpha_f32).astype(compute_dtype)
    return (a.astype(compute_dtype) * w0 + b.astype(compute_dtype) * w1).astype(out_dtype)


@jax.jit
def fadein_forward(x0, x1, alpha):
    """x0, x1: same shape/dtype arrays (e.g. NCHW). alpha: f32 scalar."""
    assert x0.shape == x1.shape and x0.dtype == x1.dtype
    orig_shape = x0.shape
    out_dtype = x0.dtype
    total = x0.size
    itemsize = jnp.dtype(out_dtype).itemsize

    # bf16 lerps natively (bf16 VALU on v6e/v7x); everything else in f32.
    # TODO(synk): integer inputs compute in f32 and truncate on the cast back,
    # whereas PyTorch would type-promote the result to float.
    compute_dtype = jnp.bfloat16 if out_dtype == jnp.bfloat16 else jnp.float32

    alpha_f32 = jnp.asarray(alpha, jnp.float32)
    a_flat = jnp.ravel(x0)
    b_flat = jnp.ravel(x1)

    tail = total % _LANE
    main = total - tail

    if main == 0:  # tiny input: plain XLA lerp, no kernel
        out_flat = _lerp_xla(a_flat, b_flat, alpha_f32, compute_dtype, out_dtype)
        return out_flat.reshape(orig_shape)

    a_main = a_flat[:main] if tail else a_flat
    b_main = b_flat[:main] if tail else b_flat

    rows, width, tm = _choose_layout(main, itemsize)
    a2 = a_main.reshape(rows, width)
    b2 = b_main.reshape(rows, width)

    grid = (pl.cdiv(rows, tm),)
    tile_bytes = tm * width * itemsize
    # 3 arrays x 2 pipeline buffers x tile + ~25% headroom, clamped to sane range.
    vmem_limit = max(8 << 20, min(int(6 * tile_bytes * 1.25) + (1 << 20), 64 << 20))

    weights = jnp.stack([alpha_f32, 1.0 - alpha_f32])  # (2,) f32 -> SMEM

    kernel = functools.partial(_fadein_kernel, compute_dtype=compute_dtype)
    out2 = pl.pallas_call(
        kernel,
        out_shape=jax.ShapeDtypeStruct((rows, width), out_dtype),
        grid=grid,
        in_specs=[
            pl.BlockSpec(memory_space=pltpu.SMEM),        # [alpha, 1-alpha]
            pl.BlockSpec((tm, width), lambda i: (i, 0)),  # x0 tile
            pl.BlockSpec((tm, width), lambda i: (i, 0)),  # x1 tile
        ],
        out_specs=pl.BlockSpec((tm, width), lambda i: (i, 0)),
        compiler_params=pltpu.CompilerParams(
            dimension_semantics=("parallel",),
            vmem_limit_bytes=vmem_limit,
        ),
        cost_estimate=pl.CostEstimate(
            flops=3 * main,
            transcendentals=0,
            bytes_accessed=3 * main * itemsize,
        ),
    )(weights, a2, b2)

    out_flat = out2.reshape(-1)
    if tail:
        out_tail = _lerp_xla(a_flat[main:], b_flat[main:], alpha_f32,
                             compute_dtype, out_dtype)
        out_flat = jnp.concatenate([out_flat, out_tail])
    return out_flat.reshape(orig_shape)


class FadeinLayer:
    """JAX/Pallas port of the PyTorch FadeinLayer (non-trainable alpha)."""

    def __init__(self):
        self._alpha = jnp.zeros((1,), jnp.float32)  # matches torch.Tensor([0.0])

    def set_progress(self, alpha):
        # Mirrors np.clip in the PyTorch set_progress.
        self._alpha = jnp.clip(jnp.asarray([alpha], jnp.float32), 0.0, 1.0)

    def get_progress(self):
        return float(self._alpha[0])

    def __call__(self, x):
        # x is a pair (x0, x1), mirroring torch forward(x): x[0], x[1]
        return fadein_forward(x[0], x[1], self._alpha[0])

    def __repr__(self):
        return self.__class__.__name__ + "(get_alpha = {:.2f})".format(
            self.get_progress())


if __name__ == "__main__":
    key = jax.random.PRNGKey(0)
    k0, k1, k2, k3 = jax.random.split(key, 4)

    # NCHW, small shape (total divisible by 128 -> no-tail fast path)
    x0 = jax.random.normal(k0, (2, 4, 16, 16), dtype=jnp.float32)
    x1 = jax.random.normal(k1, (2, 4, 16, 16), dtype=jnp.float32)

    layer = FadeinLayer()

    # alpha = 0.0 (as in __init__): output must equal x0
    out0 = jax.block_until_ready(layer((x0, x1)))
    assert jnp.allclose(out0, x0, atol=1e-6), "alpha=0 mismatch"

    # alpha = 0.75 via set_progress
    layer.set_progress(0.75)
    out1 = jax.block_until_ready(layer((x0, x1)))
    ref1 = x0 * (1.0 - 0.75) + x1 * 0.75
    assert jnp.allclose(out1, ref1, atol=1e-5), "alpha=0.75 mismatch"

    # Ragged shape exercising the prefix + XLA-tail path (no pad round trip)
    y0 = jax.random.normal(k2, (3, 5, 7, 11), dtype=jnp.float32)
    y1 = jax.random.normal(k3, (3, 5, 7, 11), dtype=jnp.float32)
    layer.set_progress(0.3)
    out2 = jax.block_until_ready(layer((y0, y1)))
    ref2 = y0 * (1.0 - 0.3) + y1 * 0.3
    assert jnp.allclose(out2, ref2, atol=1e-5), "ragged-shape mismatch"

    # bf16 path (native bf16 lerp inside the kernel)
    z0 = jax.random.normal(k2, (2, 4, 16, 16), dtype=jnp.float32).astype(jnp.bfloat16)
    z1 = jax.random.normal(k3, (2, 4, 16, 16), dtype=jnp.float32).astype(jnp.bfloat16)
    layer.set_progress(0.5)
    out3 = jax.block_until_ready(layer((z0, z1)))
    ref3 = (z0 * jnp.bfloat16(0.5) + z1 * jnp.bfloat16(0.5))
    assert jnp.allclose(out3.astype(jnp.float32), ref3.astype(jnp.float32),
                        atol=2e-2), "bf16 mismatch"

    print("KERNEL_OK")
</pallas_src>

<mosaic_0001>
module attributes {stable_mosaic.version = 11 : i64} {
  func.func @_fadein_kernel(%arg0: i32, %arg1: memref<2xf32, #tpu.memory_space<smem>>, %arg2: memref<8x256xf32, #tpu.memory_space<vmem>>, %arg3: memref<8x256xf32, #tpu.memory_space<vmem>>, %arg4: memref<8x256xf32, #tpu.memory_space<vmem>>) attributes {dimension_semantics = [#tpu.dimension_semantics<parallel>], iteration_bounds = array<i64: 1>, scalar_prefetch = 0 : i64, scratch_operands = 0 : i64, tpu.core_type = #tpu.core_type<tc>, window_params = [{transform_indices = @transform_0, window_bounds = array<i64: 2>}, {transform_indices = @transform_1, window_bounds = array<i64: 8, 256>}, {transform_indices = @transform_2, window_bounds = array<i64: 8, 256>}, {transform_indices = @transform_3, window_bounds = array<i64: 8, 256>}]} {
    %c0 = arith.constant 0 : index
    %0 = memref.load %arg1[%c0] : memref<2xf32, #tpu.memory_space<smem>>
    %c1 = arith.constant 1 : index
    %1 = memref.load %arg1[%c1] : memref<2xf32, #tpu.memory_space<smem>>
    %c0_0 = arith.constant 0 : index
    %c0_1 = arith.constant 0 : index
    %2 = vector.load %arg2[%c0_0, %c0_1] : memref<8x256xf32, #tpu.memory_space<vmem>>, vector<8x256xf32>
    %c0_2 = arith.constant 0 : index
    %c0_3 = arith.constant 0 : index
    %3 = vector.load %arg3[%c0_2, %c0_3] : memref<8x256xf32, #tpu.memory_space<vmem>>, vector<8x256xf32>
    %4 = vector.broadcast %1 : f32 to vector<8x256xf32>
    %5 = arith.mulf %2, %4 : vector<8x256xf32>
    %6 = vector.broadcast %0 : f32 to vector<8x256xf32>
    %7 = arith.mulf %3, %6 : vector<8x256xf32>
    %8 = arith.addf %5, %7 : vector<8x256xf32>
    %c0_4 = arith.constant 0 : index
    %c0_5 = arith.constant 0 : index
    %9 = vector.load %arg4[%c0_4, %c0_5] : memref<8x256xf32, #tpu.memory_space<vmem>>, vector<8x256xf32>
    tpu.vector_store %arg4[%c0_4, %c0_5], %8 {strides = array<i32>} : memref<8x256xf32, #tpu.memory_space<vmem>>, vector<8x256xf32>,
    return
  }
  func.func @transform_0(%arg0: i32) -> i32 {
    %c0_i32 = arith.constant 0 : i32
    %c0_i32_0 = arith.constant 0 : i32
    return %c0_i32 : i32
  }
  func.func @transform_1(%arg0: i32) -> (i32, i32) {
    %c0_i32 = arith.constant 0 : i32
    %c0_i32_0 = arith.constant 0 : i32
    return %arg0, %c0_i32 : i32, i32
  }
  func.func @transform_2(%arg0: i32) -> (i32, i32) {
    %c0_i32 = arith.constant 0 : i32
    %c0_i32_0 = arith.constant 0 : i32
    return %arg0, %c0_i32 : i32, i32
  }
  func.func @transform_3(%arg0: i32) -> (i32, i32) {
    %c0_i32 = arith.constant 0 : i32
    %c0_i32_0 = arith.constant 0 : i32
    return %arg0, %c0_i32 : i32, i32
  }
}

</mosaic_0001>

<llo_original>
// kernel: fadein_forward.1
$region0: #{fadein_forward.1}
  #allocation0 [shape = 'u32[]', space=smem, size = 0x4, offset = 0x4, fixed_abs, tag = 'smem constant byte address 0x4 - core index']
  #allocation1 [shape = 'u32[144,128]{1,0:T(1,128)}', space=vmem, size = 0x12000, scoped, tag = 'internal scratch']
  %s0 = inlined_call_operand.vmem [shape: f32[2], index: 0, kind: input, shape index: {}]
  %s1 = inlined_call_operand.vmem [shape: f32[8,256], index: 1, kind: input, shape index: {}]
  %s2 = inlined_call_operand.vmem [shape: f32[8,256], index: 2, kind: input, shape index: {}]
  %s3 = inlined_call_operand.vmem [shape: f32[8,256], index: 3, kind: output, shape index: {}]
  %s4 = sld [smem:[#allocation0]]
  $region26: #{fadein_forward.1} parent=0
    _
  %s6 = ssub.s32 1, %s4
  %s7 = scalar_select 0, %s6, %s4
  $region1: #{fadein_forward.1} parent=0
    #allocation2 [shape = 'u8[512]{0}', space=smem, size = 0x200, scoped, tag = 'input window, operand 0, single buffered']
    #allocation3 [shape = 's32[1]{0}', space=sflag, size = 0x4, scoped, tag = 'scoped memory for fadein_forward.1']
    %8 = vsyncpa [#allocation3], 0
    // Predicated region
    $region2: #{fadein_forward.1} parent=1 // pred_check
      _
    $region3: #{fadein_forward.1} parent=1 // pred_check_branch
      %10 = sbr.rel (0) target = $region5
    $region4: #{fadein_forward.1} parent=1 // pred_region
      %s12 = ssub.s32 16, 16
      %13 = vsyncadd [#allocation3], %s12
      %s15 = sshll.u32 %s0, 4
      %s16 = int_to_ptr.vmem [resolvable:$true] %s15
      %18 = dma.vmem_to_smem %s16, 16, [#allocation2], [#allocation3]
    $region5: #{fadein_forward.1} parent=1 // pred_fallthru
      _
    // Predicated region
    $region6: #{fadein_forward.1} parent=1 // pred_check
      _
    $region7: #{fadein_forward.1} parent=1 // pred_check_branch
      %20 = sbr.rel (0) target = $region9
    $region8: #{fadein_forward.1} parent=1 // pred_region
      _
    $region9: #{fadein_forward.1} parent=1 // pred_fallthru
      _
    // Predicated region
    $region10: #{fadein_forward.1} parent=1 // pred_check
      _
    $region11: #{fadein_forward.1} parent=1 // pred_check_branch
      %22 = sbr.rel (0) target = $region13
    $region12: #{fadein_forward.1} parent=1 // pred_region
      _
    $region13: #{fadein_forward.1} parent=1 // pred_fallthru
      _
    // Predicated region
    $region14: #{fadein_forward.1} parent=1 // pred_check
      _
    $region15: #{fadein_forward.1} parent=1 // pred_check_branch
      %24 = sbr.rel (0) target = $region17
    $region16: #{fadein_forward.1} parent=1 // pred_region
      %25 = dma.done [#allocation3], 16
    $region17: #{fadein_forward.1} parent=1 // pred_fallthru
      _
    %26 = sfence
    %s27 = sld [smem:[#allocation2]]
    %s28 = sld [smem:[#allocation2 + $0x1]]
    %v29 = vld [vmem:[%s1] sm:$0xff]
    %v30 = vld [vmem:[%s1 + $0x8] sm:$0xff]
    %v31 = vld [vmem:[%s2] sm:$0xff]
    %v32 = vld [vmem:[%s2 + $0x8] sm:$0xff]
    %v33 = vstv %s28
    %v34 = vmul.f32 %v29, %v33
    %v35 = vmul.f32 %v30, %v33
    %v36 = vstv %s27
    %v37 = vmul.f32 %v31, %v36
    %v38 = vmul.f32 %v32, %v36
    %v39 = vadd.f32 %v34, %v37
    %v40 = vadd.f32 %v35, %v38
    %41 = vst [vmem:[%s3] sm:$0xff] %v39
    %42 = vst [vmem:[%s3 + $0x8] sm:$0xff] %v40
    // Predicated region
    $region18: #{fadein_forward.1} parent=1 // pred_check
      _
    $region19: #{fadein_forward.1} parent=1 // pred_check_branch
      %44 = sbr.rel (0) target = $region21
    $region20: #{fadein_forward.1} parent=1 // pred_region
      _
    $region21: #{fadein_forward.1} parent=1 // pred_fallthru
      _
    // Predicated region
    $region22: #{fadein_forward.1} parent=1 // pred_check
      _
    $region23: #{fadein_forward.1} parent=1 // pred_check_branch
      %46 = sbr.rel (0) target = $region25
    $region24: #{fadein_forward.1} parent=1 // pred_region
      _
    $region25: #{fadein_forward.1} parent=1 // pred_fallthru
      _
    %47 = vsyncpa [#allocation3], 1

</llo_original>
